<compile_context>
chip_gen: v6e
topology: v6e:2x2x1
jax: 0.10.0
libtpu: 0.0.40
codegen_flags: <defaults>
</compile_context>

<pallas_src>
import functools
import math

import jax
import jax.numpy as jnp
from jax import lax
from jax.experimental import pallas as pl
from jax.experimental.pallas import tpu as pltpu


# --------------------------------------------------------------------------- #
# Helpers
# --------------------------------------------------------------------------- #
def _round_up(x, m):
    return ((x + m - 1) // m) * m


def _pick_tile(dim, candidates, align):
    """Pick (tile, padded_dim).

    If `dim` fits inside the largest candidate, use a single align-rounded
    block (minimal padding, single grid block).  Otherwise pick the candidate
    that minimizes the padded extent (i.e. wasted FLOPs / HBM traffic); ties
    go to the larger tile.
    """
    if dim <= candidates[0]:
        t = _round_up(dim, align)
        return t, t
    best_t, best_pad = None, None
    for t in candidates:
        pad = _round_up(dim, t)
        if best_pad is None or pad < best_pad or (pad == best_pad and t > best_t):
            best_t, best_pad = t, pad
    return best_t, best_pad


# --------------------------------------------------------------------------- #
# Kernel
# --------------------------------------------------------------------------- #
def _linear_gelu_kernel(x_ref, w_ref, b_ref, o_ref, acc_ref):
    """o = GELU(x @ w + b), exact erf GELU.

    x_ref  : (tm, tk)  input tile
    w_ref  : (tk, tn)  weight tile, already transposed to (K, N) layout
    b_ref  : (1,  tn)  bias tile
    o_ref  : (tm, tn)  output tile
    acc_ref: (tm, tn)  f32 accumulator scratch (persists across K steps)
    """
    k = pl.program_id(2)

    @pl.when(k == 0)
    def _init():
        acc_ref[...] = jnp.zeros_like(acc_ref)

    # Plain (tm,tk) @ (tk,tn) matmul on the MXU with f32 accumulation.
    acc_ref[...] += jnp.dot(
        x_ref[...], w_ref[...], preferred_element_type=jnp.float32
    )

    @pl.when(k == pl.num_programs(2) - 1)
    def _finalize():
        y = acc_ref[...] + b_ref[...].astype(jnp.float32)
        # Exact GELU: 0.5 * y * (1 + erf(y / sqrt(2)))  (PyTorch F.gelu default).
        inv_sqrt2 = jnp.float32(0.7071067811865476)
        out = 0.5 * y * (1.0 + lax.erf(y * inv_sqrt2))
        o_ref[...] = out.astype(o_ref.dtype)


# --------------------------------------------------------------------------- #
# Jitted 2-D call (x already flattened to (M, K); weight/bias pre-padded)
# --------------------------------------------------------------------------- #
@functools.partial(jax.jit, static_argnames=("n_dim", "tn", "tk"))
def _linear_gelu_2d(x2d, w_kn, b2d, n_dim, tn, tk):
    m_dim, k_dim = x2d.shape
    k_pad, n_pad = w_kn.shape

    # Tile M at call time (M varies per call; N/K tiling is fixed at prep time).
    tm, m_pad = _pick_tile(m_dim, (512, 256, 128), 8)

    # Pad x only when actually unaligned (zeros are inert in the contraction).
    if m_pad != m_dim or k_pad != k_dim:
        x2d = jnp.pad(x2d, ((0, m_pad - m_dim), (0, k_pad - k_dim)))

    grid = (m_pad // tm, n_pad // tn, k_pad // tk)

    in_bytes = x2d.dtype.itemsize
    w_bytes = w_kn.dtype.itemsize
    out_bytes = x2d.dtype.itemsize

    # Double-buffered inputs/outputs + f32 accumulator + headroom.
    # Cap well below v7x's 64 MiB per-TensorCore VMEM; explicitly above v5e's
    # 16 MiB scoped default when tiles need it.
    tile_vmem = (
        2 * tm * tk * in_bytes            # x tile, double-buffered
        + 2 * (tk * tn + tn) * w_bytes    # weight + bias tiles, double-buffered
        + 2 * tm * tn * out_bytes         # output tile, double-buffered
        + tm * tn * 4                     # f32 accumulator scratch
    )
    vmem_limit = int(min(tile_vmem + (4 << 20), 48 << 20))

    cost = pl.CostEstimate(
        flops=2 * m_pad * n_pad * k_pad,
        transcendentals=m_pad * n_pad,
        bytes_accessed=(
            m_pad * k_pad * in_bytes
            + n_pad * k_pad * w_bytes
            + n_pad * w_bytes
            + m_pad * n_pad * out_bytes
        ),
    )

    out2d = pl.pallas_call(
        _linear_gelu_kernel,
        out_shape=jax.ShapeDtypeStruct((m_pad, n_pad), x2d.dtype),
        grid=grid,
        in_specs=[
            pl.BlockSpec((tm, tk), lambda i, j, kk: (i, kk)),   # x tile
            pl.BlockSpec((tk, tn), lambda i, j, kk: (kk, j)),   # weight (K,N) tile
            pl.BlockSpec((1, tn), lambda i, j, kk: (0, j)),     # bias tile
        ],
        out_specs=pl.BlockSpec((tm, tn), lambda i, j, kk: (i, j)),
        scratch_shapes=[pltpu.VMEM((tm, tn), jnp.float32)],
        compiler_params=pltpu.CompilerParams(
            dimension_semantics=("parallel", "parallel", "arbitrary"),
            vmem_limit_bytes=vmem_limit,
        ),
        cost_estimate=cost,
    )(x2d, w_kn, b2d)

    if m_pad != m_dim or n_pad != n_dim:
        out2d = out2d[:m_dim, :n_dim]
    return out2d


# --------------------------------------------------------------------------- #
# Module-style wrapper (parameter prep hoisted out of the hot path)
# --------------------------------------------------------------------------- #
class LinearGELU:
    """Pallas-TPU fused Linear + GELU matching the PyTorch LinearGELU forward.

    weight: (out_features, in_features) in PyTorch layout; transposed/padded
    once at construction.  __call__(x) with x: (..., in_features).
    """

    _TN_CANDIDATES = (512, 384, 256, 128)
    _TK_CANDIDATES = (1024, 768, 512, 384, 256, 128)

    def __init__(self, weight, bias=None):
        weight = jnp.asarray(weight)
        n_dim, k_dim = weight.shape
        if bias is None:
            bias = jnp.zeros((n_dim,), weight.dtype)
        bias = jnp.asarray(bias)

        self.n_dim, self.k_dim = n_dim, k_dim
        self.tn, self.n_pad = _pick_tile(n_dim, self._TN_CANDIDATES, 128)
        self.tk, self.k_pad = _pick_tile(k_dim, self._TK_CANDIDATES, 128)

        # One-time parameter prep: transpose to (K, N) so the kernel runs a
        # plain x @ w matmul (no per-tile XLU transpose), and zero-pad to the
        # tile grid.  This is NOT in the per-call jit path.
        w_kn = weight.T
        self.w_kn = jnp.pad(
            w_kn, ((0, self.k_pad - k_dim), (0, self.n_pad - n_dim))
        )
        self.b2d = jnp.pad(bias, (0, self.n_pad - n_dim)).reshape(1, self.n_pad)

    def __call__(self, x):
        *lead, k_in = x.shape
        assert k_in == self.k_dim, f"expected last dim {self.k_dim}, got {k_in}"
        m_dim = math.prod(lead) if lead else 1
        x2d = x.reshape(m_dim, k_in)
        out2d = _linear_gelu_2d(
            x2d, self.w_kn, self.b2d, self.n_dim, self.tn, self.tk
        )
        return out2d.reshape(*lead, self.n_dim)


# --------------------------------------------------------------------------- #
# Reference + test
# --------------------------------------------------------------------------- #
def _reference(x, weight, bias):
    y = jnp.einsum("...k,nk->...n", x, weight) + bias
    return jax.nn.gelu(y, approximate=False)


if __name__ == "__main__":
    # Small shapes consistent with nn.Linear usage: (batch, seq, in_features).
    batch, seq, in_features, out_features = 2, 8, 32, 64

    key = jax.random.PRNGKey(0)
    kx, kw, kb = jax.random.split(key, 3)

    x = jax.random.normal(kx, (batch, seq, in_features), dtype=jnp.float32)
    weight = jax.random.normal(kw, (out_features, in_features), dtype=jnp.float32) * 0.05
    bias = jax.random.normal(kb, (out_features,), dtype=jnp.float32) * 0.01

    layer = LinearGELU(weight, bias)
    out = jax.block_until_ready(layer(x))
    ref = _reference(x, weight, bias)
    assert out.shape == (batch, seq, out_features)
    assert jnp.allclose(out, ref, atol=1e-5, rtol=1e-5), (
        f"max abs err {jnp.max(jnp.abs(out - ref))}"
    )

    # Ragged N (320 -> pads to 384, not 512) + non-trivial M.
    xl = jax.random.normal(kx, (4, 96, 384), dtype=jnp.float32)
    wl = jax.random.normal(kw, (320, 384), dtype=jnp.float32) * 0.02
    bl = jax.random.normal(kb, (320,), dtype=jnp.float32) * 0.01
    layer_l = LinearGELU(wl, bl)
    out_l = jax.block_until_ready(layer_l(xl))
    ref_l = _reference(xl, wl, bl)
    assert jnp.allclose(out_l, ref_l, atol=2e-4, rtol=2e-4), (
        f"max abs err (ragged-N) {jnp.max(jnp.abs(out_l - ref_l))}"
    )

    # Deep-K case exercising the multi-step K-reduction grid (tk=768, 2 steps).
    xk = jax.random.normal(kx, (2, 256, 1536), dtype=jnp.float32)
    wk = jax.random.normal(kw, (256, 1536), dtype=jnp.float32) * 0.02
    bk = jax.random.normal(kb, (256,), dtype=jnp.float32) * 0.01
    layer_k = LinearGELU(wk, bk)
    out_k = jax.block_until_ready(layer_k(xk))
    ref_k = _reference(xk, wk, bk)
    assert jnp.allclose(out_k, ref_k, atol=5e-4, rtol=5e-4), (
        f"max abs err (deep-K) {jnp.max(jnp.abs(out_k - ref_k))}"
    )

    print("KERNEL_OK")
</pallas_src>

<mosaic_0001>
module attributes {stable_mosaic.version = 11 : i64} {
  func.func @_linear_gelu_kernel(%arg0: i32, %arg1: i32, %arg2: i32, %arg3: memref<16x128xf32, #tpu.memory_space<vmem>>, %arg4: memref<128x128xf32, #tpu.memory_space<vmem>>, %arg5: memref<1x128xf32, #tpu.memory_space<vmem>>, %arg6: memref<16x128xf32, #tpu.memory_space<vmem>>, %arg7: memref<16x128xf32, #tpu.memory_space<vmem>>) attributes {dimension_semantics = [#tpu.dimension_semantics<parallel>, #tpu.dimension_semantics<parallel>, #tpu.dimension_semantics<arbitrary>], iteration_bounds = array<i64: 1, 1, 1>, scalar_prefetch = 0 : i64, scratch_operands = 1 : i64, tpu.core_type = #tpu.core_type<tc>, window_params = [{transform_indices = @transform_0, window_bounds = array<i64: 16, 128>}, {transform_indices = @transform_1, window_bounds = array<i64: 128, 128>}, {transform_indices = @transform_2, window_bounds = array<i64: 1, 128>}, {transform_indices = @transform_3, window_bounds = array<i64: 16, 128>}]} {
    %c0_i32 = arith.constant 0 : i32
    %0 = arith.cmpi eq, %arg2, %c0_i32 : i32
    %1 = arith.extui %0 : i1 to i32
    %c0_i32_0 = arith.constant 0 : i32
    %2 = arith.cmpi ne, %1, %c0_i32_0 : i32
    scf.if %2 {
      %cst_10 = arith.constant 0.000000e+00 : f32
      %12 = vector.broadcast %cst_10 : f32 to vector<16x128xf32>
      %c0_11 = arith.constant 0 : index
      %c0_12 = arith.constant 0 : index
      %13 = vector.load %arg7[%c0_11, %c0_12] : memref<16x128xf32, #tpu.memory_space<vmem>>, vector<16x128xf32>
      tpu.vector_store %arg7[%c0_11, %c0_12], %12 {strides = array<i32>} : memref<16x128xf32, #tpu.memory_space<vmem>>, vector<16x128xf32>,
    } else {
    }
    %c0 = arith.constant 0 : index
    %c0_1 = arith.constant 0 : index
    %3 = vector.load %arg7[%c0, %c0_1] : memref<16x128xf32, #tpu.memory_space<vmem>>, vector<16x128xf32>
    %c0_2 = arith.constant 0 : index
    %c0_3 = arith.constant 0 : index
    %4 = vector.load %arg3[%c0_2, %c0_3] : memref<16x128xf32, #tpu.memory_space<vmem>>, vector<16x128xf32>
    %c0_4 = arith.constant 0 : index
    %c0_5 = arith.constant 0 : index
    %5 = vector.load %arg4[%c0_4, %c0_5] : memref<128x128xf32, #tpu.memory_space<vmem>>, vector<128x128xf32>
    %cst = arith.constant dense<0.000000e+00> : vector<16x128xf32>
    %6 = tpu.matmul %4, %5, %cst {dimension_numbers = #tpu.dot_dimension_numbers<[1], [0], [0], [1], [0, 0, 1, 1], [], []>} : vector<16x128xf32>, vector<128x128xf32>, vector<16x128xf32> -> vector<16x128xf32>
    %7 = arith.addf %3, %6 : vector<16x128xf32>
    %c0_6 = arith.constant 0 : index
    %c0_7 = arith.constant 0 : index
    %8 = vector.load %arg7[%c0_6, %c0_7] : memref<16x128xf32, #tpu.memory_space<vmem>>, vector<16x128xf32>
    tpu.vector_store %arg7[%c0_6, %c0_7], %7 {strides = array<i32>} : memref<16x128xf32, #tpu.memory_space<vmem>>, vector<16x128xf32>,
    %c0_i32_8 = arith.constant 0 : i32
    %9 = arith.cmpi eq, %arg2, %c0_i32_8 : i32
    %10 = arith.extui %9 : i1 to i32
    %c0_i32_9 = arith.constant 0 : i32
    %11 = arith.cmpi ne, %10, %c0_i32_9 : i32
    scf.if %11 {
      %c0_10 = arith.constant 0 : index
      %c0_11 = arith.constant 0 : index
      %12 = vector.load %arg7[%c0_10, %c0_11] : memref<16x128xf32, #tpu.memory_space<vmem>>, vector<16x128xf32>
      %c0_12 = arith.constant 0 : index
      %c0_13 = arith.constant 0 : index
      %13 = vector.load %arg5[%c0_12, %c0_13] : memref<1x128xf32, #tpu.memory_space<vmem>>, vector<1x128xf32>
      %14 = vector.broadcast %13 : vector<1x128xf32> to vector<16x128xf32>
      %15 = arith.addf %12, %14 : vector<16x128xf32>
      %cst_14 = arith.constant 5.000000e-01 : f32
      %16 = vector.broadcast %cst_14 : f32 to vector<16x128xf32>
      %17 = arith.mulf %16, %15 : vector<16x128xf32>
      %cst_15 = arith.constant 0.707106769 : f32
      %18 = vector.broadcast %cst_15 : f32 to vector<16x128xf32>
      %19 = arith.mulf %15, %18 : vector<16x128xf32>
      %20 = math.erf %19 : vector<16x128xf32>
      %cst_16 = arith.constant 1.000000e+00 : f32
      %21 = vector.broadcast %cst_16 : f32 to vector<16x128xf32>
      %22 = arith.addf %21, %20 : vector<16x128xf32>
      %23 = arith.mulf %17, %22 : vector<16x128xf32>
      %c0_17 = arith.constant 0 : index
      %c0_18 = arith.constant 0 : index
      %24 = vector.load %arg6[%c0_17, %c0_18] : memref<16x128xf32, #tpu.memory_space<vmem>>, vector<16x128xf32>
      tpu.vector_store %arg6[%c0_17, %c0_18], %23 {strides = array<i32>} : memref<16x128xf32, #tpu.memory_space<vmem>>, vector<16x128xf32>,
    } else {
    }
    return
  }
  func.func @transform_0(%arg0: i32, %arg1: i32, %arg2: i32) -> (i32, i32) {
    %c0_i32 = arith.constant 0 : i32
    return %arg0, %arg2 : i32, i32
  }
  func.func @transform_1(%arg0: i32, %arg1: i32, %arg2: i32) -> (i32, i32) {
    %c0_i32 = arith.constant 0 : i32
    return %arg2, %arg1 : i32, i32
  }
  func.func @transform_2(%arg0: i32, %arg1: i32, %arg2: i32) -> (i32, i32) {
    %c0_i32 = arith.constant 0 : i32
    %c0_i32_0 = arith.constant 0 : i32
    return %c0_i32, %arg1 : i32, i32
  }
  func.func @transform_3(%arg0: i32, %arg1: i32, %arg2: i32) -> (i32, i32) {
    %c0_i32 = arith.constant 0 : i32
    return %arg0, %arg1 : i32, i32
  }
}

</mosaic_0001>

<llo_original>
// kernel: _linear_gelu_2d.1
$region0: #{_linear_gelu_2d.1}
  #allocation0 [shape = 'u32[]', space=smem, size = 0x4, offset = 0x4, fixed_abs, tag = 'smem constant byte address 0x4 - core index']
  #allocation1 [shape = 'u32[144,128]{1,0:T(1,128)}', space=vmem, size = 0x12000, scoped, tag = 'internal scratch']
  #allocation2 [shape = 'f32[16,128]{1,0:T(8,128)}', space=vmem, size = 0x2000, scoped, tag = 'scratch operand']
  %s0 = inlined_call_operand.vmem [shape: f32[16,128], index: 0, kind: input, shape index: {}]
  %s1 = inlined_call_operand.hbm [shape: f32[128,128], index: 1, kind: input, shape index: {}]
  %s2 = inlined_call_operand.vmem [shape: f32[1,128], index: 2, kind: input, shape index: {}]
  %s3 = inlined_call_operand.hbm [shape: f32[16,128], index: 3, kind: output, shape index: {}]
  %s4 = sld [smem:[#allocation0]]
  $region34: #{_linear_gelu_2d.1} parent=0
    _
  %s6 = ssub.s32 1, %s4
  %s7 = scalar_select 0, %s6, %s4
  $region1: #{_linear_gelu_2d.1} parent=0
    #allocation3 [shape = 'u8[65536]{0}', space=vmem, size = 0x10000, scoped, tag = 'input window, operand 1, single buffered']
    #allocation4 [shape = 's32[1]{0}', space=sflag, size = 0x4, scoped, tag = 'scoped memory for _linear_gelu_2d.1']
    #allocation5 [shape = 's32[1]{0}', space=sflag, size = 0x4, scoped, tag = 'scoped memory for _linear_gelu_2d.1']
    #allocation6 [shape = 'u8[8192]{0}', space=vmem, size = 0x2000, scoped, tag = 'output window, operand 0, single buffered']
    %8 = vsyncpa [#allocation4], 0
    %9 = vsyncpa [#allocation5], 0
    // Predicated region
    $region2: #{_linear_gelu_2d.1} parent=1 // pred_check
      _
    $region3: #{_linear_gelu_2d.1} parent=1 // pred_check_branch
      %11 = sbr.rel (0) target = $region5
    $region4: #{_linear_gelu_2d.1} parent=1 // pred_region
      _
    $region5: #{_linear_gelu_2d.1} parent=1 // pred_fallthru
      _
    // Predicated region
    $region6: #{_linear_gelu_2d.1} parent=1 // pred_check
      _
    $region7: #{_linear_gelu_2d.1} parent=1 // pred_check_branch
      %13 = sbr.rel (0) target = $region9
    $region8: #{_linear_gelu_2d.1} parent=1 // pred_region
      %s15 = ssub.s32 2048, 2048
      %16 = vsyncadd [#allocation4], %s15
      %s17 = sshll.u32 [#allocation3], 4
      %s18 = int_to_ptr.vmem [resolvable:$true] %s17
      %23 = dma.hbm_to_vmem [thread:$0]  %s1, 2048, %s18, [#allocation4], 128, 128, 8
    $region9: #{_linear_gelu_2d.1} parent=1 // pred_fallthru
      _
    // Predicated region
    $region10: #{_linear_gelu_2d.1} parent=1 // pred_check
      _
    $region11: #{_linear_gelu_2d.1} parent=1 // pred_check_branch
      %25 = sbr.rel (0) target = $region13
    $region12: #{_linear_gelu_2d.1} parent=1 // pred_region
      _
    $region13: #{_linear_gelu_2d.1} parent=1 // pred_fallthru
      _
    // Predicated region
    $region14: #{_linear_gelu_2d.1} parent=1 // pred_check
      _
    $region15: #{_linear_gelu_2d.1} parent=1 // pred_check_branch
      %27 = sbr.rel (0) target = $region17
    $region16: #{_linear_gelu_2d.1} parent=1 // pred_region
      %28 = dma.done [#allocation4], 2048
    $region17: #{_linear_gelu_2d.1} parent=1 // pred_fallthru
      _
    %p29 = scmp.eq.s32.totalorder 0, 0
    // Predicated region
    $region18: #{_linear_gelu_2d.1} parent=1 // pred_check
      %p30 = pneg %p29
    $region19: #{_linear_gelu_2d.1} parent=1 // pred_check_branch
      %32 = sbr.rel (%p30) target = $region21
    $region20: #{_linear_gelu_2d.1} parent=1 // pred_region
      %33 = vst [vmem:[#allocation2] sm:$0xff] 0.0
      %34 = vst [vmem:[#allocation2 + $0x8] sm:$0xff] 0.0
    $region21: #{_linear_gelu_2d.1} parent=1 // pred_fallthru
      _
    %v35 = vld [vmem:[#allocation2] sm:$0xff]
    %v36 = vld [vmem:[#allocation2 + $0x8] sm:$0xff]
    %v37 = vld [vmem:[%s0] sm:$0xff]
    %v38 = vld [vmem:[%s0 + $0x8] sm:$0xff]
    %v39 = vld [vmem:[#allocation3] sm:$0xff]
    %v40 = vld [vmem:[#allocation3 + $0x8] sm:$0xff]
    %v41 = vld [vmem:[#allocation3 + $0x10] sm:$0xff]
    %v42 = vld [vmem:[#allocation3 + $0x18] sm:$0xff]
    %v43 = vld [vmem:[#allocation3 + $0x20] sm:$0xff]
    %v44 = vld [vmem:[#allocation3 + $0x28] sm:$0xff]
    %v45 = vld [vmem:[#allocation3 + $0x30] sm:$0xff]
    %v46 = vld [vmem:[#allocation3 + $0x38] sm:$0xff]
    %v47 = vld [vmem:[#allocation3 + $0x40] sm:$0xff]
    %v48 = vld [vmem:[#allocation3 + $0x48] sm:$0xff]
    %v49 = vld [vmem:[#allocation3 + $0x50] sm:$0xff]
    %v50 = vld [vmem:[#allocation3 + $0x58] sm:$0xff]
    %v51 = vld [vmem:[#allocation3 + $0x60] sm:$0xff]
    %v52 = vld [vmem:[#allocation3 + $0x68] sm:$0xff]
    %v53 = vld [vmem:[#allocation3 + $0x70] sm:$0xff]
    %v54 = vld [vmem:[#allocation3 + $0x78] sm:$0xff]
    %55 = vmatprep.subr.mxu0 0.0
    %56 = vmatpush1.msra.mxu0 %v54
    %57 = vmatprep.subr.mxu0 0.0
    %58 = vmatpush1.msra.mxu0 %v53
    %59 = vmatprep.subr.mxu0 0.0
    %60 = vmatpush1.msra.mxu0 %v52
    %61 = vmatprep.subr.mxu0 0.0
    %62 = vmatpush1.msra.mxu0 %v51
    %63 = vmatprep.subr.mxu0 0.0
    %64 = vmatpush1.msra.mxu0 %v50
    %65 = vmatprep.subr.mxu0 0.0
    %66 = vmatpush1.msra.mxu0 %v49
    %67 = vmatprep.subr.mxu0 0.0
    %68 = vmatpush1.msra.mxu0 %v48
    %69 = vmatprep.subr.mxu0 0.0
    %70 = vmatpush1.msra.mxu0 %v47
    %71 = vmatprep.subr.mxu0 0.0
    %72 = vmatpush1.msra.mxu0 %v46
    %73 = vmatprep.subr.mxu0 0.0
    %74 = vmatpush1.msra.mxu0 %v45
    %75 = vmatprep.subr.mxu0 0.0
    %76 = vmatpush1.msra.mxu0 %v44
    %77 = vmatprep.subr.mxu0 0.0
    %78 = vmatpush1.msra.mxu0 %v43
    %79 = vmatprep.subr.mxu0 0.0
    %80 = vmatpush1.msra.mxu0 %v42
    %81 = vmatprep.subr.mxu0 0.0
    %82 = vmatpush1.msra.mxu0 %v41
    %83 = vmatprep.subr.mxu0 0.0
    %84 = vmatpush1.msra.mxu0 %v40
    %85 = vmatprep.subr.mxu0 0.0
    %86 = vmatpush1.msra.mxu0 %v39
    %87 = vmatprep.subr.mxu0 0.0
    %88 = vmatpush2.msra.mxu0 0.0
    %89 = vmatprep.subr.mxu0 0.0
    %90 = vmatpush2.msra.mxu0 0.0
    %91 = vmatprep.subr.mxu0 0.0
    %92 = vmatpush2.msra.mxu0 0.0
    %93 = vmatprep.subr.mxu0 0.0
    %94 = vmatpush2.msra.mxu0 0.0
    %95 = vmatprep.subr.mxu0 0.0
    %96 = vmatpush2.msra.mxu0 0.0
    %97 = vmatprep.subr.mxu0 0.0
    %98 = vmatpush2.msra.mxu0 0.0
    %99 = vmatprep.subr.mxu0 0.0
    %100 = vmatpush2.msra.mxu0 0.0
    %101 = vmatprep.subr.mxu0 0.0
    %102 = vmatpush2.msra.mxu0 0.0
    %103 = vmatprep.subr.mxu0 0.0
    %104 = vmatpush2.msra.mxu0 0.0
    %105 = vmatprep.subr.mxu0 0.0
    %106 = vmatpush2.msra.mxu0 0.0
    %107 = vmatprep.subr.mxu0 0.0
    %108 = vmatpush2.msra.mxu0 0.0
    %109 = vmatprep.subr.mxu0 0.0
    %110 = vmatpush2.msra.mxu0 0.0
    %111 = vmatprep.subr.mxu0 0.0
    %112 = vmatpush2.msra.mxu0 0.0
    %113 = vmatprep.subr.mxu0 0.0
    %114 = vmatpush2.msra.mxu0 0.0
    %115 = vmatprep.subr.mxu0 0.0
    %116 = vmatpush2.msra.mxu0 0.0
    %117 = vmatprep.subr.mxu0 0.0
    %118 = vmatpush2.msra.mxu0 0.0
    %119 = vmatprep.mubr.f32.mxu0 0.0
    %120 = vmatmul.mubr.f32.gmra.mxu0 %v37
    %v121 = vpop.f32.mrf.mxu0
    %v122 = vadd.f32 0.0, %v121
    %v123 = vpop.f32.mrf.mxu0
    %124 = vmatprep.mubr.f32.mxu0 0.0
    %125 = vmatmul.mubr.f32.gmra.mxu0 %v38
    %v126 = vpop.f32.mrf.mxu0
    %v127 = vadd.f32 0.0, %v126
    %v128 = vpop.f32.mrf.mxu0
    %129 = vdwg.mxu0
    %v130 = vadd.f32 %v35, %v122
    %v131 = vadd.f32 %v36, %v127
    %132 = vst [vmem:[#allocation2] sm:$0xff] %v130
    %133 = vst [vmem:[#allocation2 + $0x8] sm:$0xff] %v131
    // Predicated region
    $region22: #{_linear_gelu_2d.1} parent=1 // pred_check
      %p134 = pneg %p29
    $region23: #{_linear_gelu_2d.1} parent=1 // pred_check_branch
      %136 = sbr.rel (%p134) target = $region25
    $region24: #{_linear_gelu_2d.1} parent=1 // pred_region
      %v137 = vld [vmem:[#allocation2] sm:$0xff]
      %v138 = vld [vmem:[#allocation2 + $0x8] sm:$0xff]
      %v139 = vld [vmem:[%s2] sm:$0x1]
      %v141 = vlaneseq
      %v142 = vshrl.u32 %v141, 7
      %v143 = vsub.s32 0, %v142
      %v144 = vrot.slane %v139, %v143
      %v146 = vadd.f32 %v137, %v144
      %v147 = vadd.f32 %v138, %v144
      %v148 = vmul.f32 %v146, 0.5
      %v149 = vmul.f32 %v147, 0.5
      %v150 = vmul.f32 %v146, 0.70710677
      %v151 = vmul.f32 %v147, 0.70710677
      %v152 = verf.f32.pop %v150
      %v153 = verf.f32.pop %v151
      %v154 = vadd.f32 %v152, 1.0
      %v155 = vadd.f32 %v153, 1.0
      %v156 = vmul.f32 %v148, %v154
      %v157 = vmul.f32 %v149, %v155
      %158 = vst [vmem:[#allocation6] sm:$0xff] %v156
      %159 = vst [vmem:[#allocation6 + $0x8] sm:$0xff] %v157
    $region25: #{_linear_gelu_2d.1} parent=1 // pred_fallthru
      _
    // Predicated region
    $region26: #{_linear_gelu_2d.1} parent=1 // pred_check
      _
    $region27: #{_linear_gelu_2d.1} parent=1 // pred_check_branch
      %161 = sbr.rel (0) target = $region29
    $region28: #{_linear_gelu_2d.1} parent=1 // pred_region
      %s163 = ssub.s32 256, 256
      %164 = vsyncadd [#allocation5], %s163
      %s165 = sshll.u32 [#allocation6], 4
      %s166 = int_to_ptr.vmem [resolvable:$true] %s165
      %171 = dma.vmem_to_hbm [thread:$0]  %s166, 256, %s3, [#allocation5], 128, 128, 8
    $region29: #{_linear_gelu_2d.1} parent=1 // pred_fallthru
      _
    // Predicated region
    $region30: #{_linear_gelu_2d.1} parent=1 // pred_check
      _
    $region31: #{_linear_gelu_2d.1} parent=1 // pred_check_branch
      %173 = sbr.rel (0) target = $region33
    $region32: #{_linear_gelu_2d.1} parent=1 // pred_region
      %174 = dma.done [#allocation5], 256
    $region33: #{_linear_gelu_2d.1} parent=1 // pred_fallthru
      _
    %175 = vsyncpa [#allocation4], 1
    %176 = vsyncpa [#allocation5], 1

</llo_original>
